<compile_context>
chip_gen: v6e
topology: v6e:2x2x1
jax: 0.10.0
libtpu: 0.0.40
codegen_flags: <defaults>
</compile_context>

<pallas_src>
import functools

import jax
import jax.numpy as jnp
from jax import lax
from jax.experimental import pallas as pl
from jax.experimental.pallas import tpu as pltpu


# ----------------------------- kernels --------------------------------------


def _conv_relu_stats_kernel(x_ref, w_ref, b_ref, y_ref, stats_ref, patch_ref,
                            *, K, dilation, C_in, t_tile, T_valid):
    """Dilated conv1d tile (+ bias + ReLU) and per-tile BN partial statistics.

    x_ref:     (T_halo, C_in)   padded time slab of this batch element
                                (time-major: tap windows are sublane slices)
    w_ref:     (C_out, K*C_in)  im2col-flattened weights
    b_ref:     (C_out, 1)       bias
    y_ref:     (C_out, t_tile)  activation tile, time on lanes (lane-dense)
    stats_ref: (C_out, 2)       [sum, sum-of-squares] over valid time steps
    patch_ref: (t_tile, K*C_in) VMEM scratch holding the im2col patch
    """
    t = pl.program_id(1)
    base = pl.multiple_of(t * t_tile, 8)     # t_tile is 8-aligned (or t == 0)

    # im2col: stack the K dilated tap windows along the contraction axis so
    # the MXU sees a single matmul with contraction K*C_in instead of K thin
    # ones.  K is a small static constant, so this unrolls.
    for k in range(K):
        patch_ref[:, k * C_in:(k + 1) * C_in] = (
            x_ref[pl.ds(base + k * dilation, t_tile), :])

    # (C_out, K*C_in) x (t_tile, K*C_in)^T -> (C_out, t_tile), f32 accumulate.
    y = lax.dot_general(
        w_ref[...], patch_ref[...],
        dimension_numbers=(((1,), (1,)), ((), ())),
        preferred_element_type=jnp.float32)
    y = jnp.maximum(y + b_ref[...], 0.0)     # bias + ReLU
    y_ref[...] = y

    # Partial BN statistics (single pass: sum and sum of squares), masking
    # time positions that only exist because T was rounded up to the tile grid.
    col = lax.broadcasted_iota(jnp.int32, y.shape, 1)
    ym = jnp.where(base + col < T_valid, y, 0.0)
    stats_ref[...] = jnp.concatenate(
        [jnp.sum(ym, axis=1, keepdims=True),
         jnp.sum(ym * ym, axis=1, keepdims=True)], axis=1)


def _bn_apply_kernel(y_ref, scale_ref, shift_ref, o_ref):
    """Tiled BatchNorm 'apply' pass: o = y * scale + shift (per channel)."""
    o_ref[...] = y_ref[...] * scale_ref[...] + shift_ref[...]


# ----------------------------- wrapper ---------------------------------------


def _vmem_limit(estimate_bytes):
    """Explicit scoped-VMEM request with headroom, capped for v7x (64 MiB)."""
    return int(min(64 * 2**20, max(32 * 2**20, 2 * estimate_bytes)))


@functools.partial(
    jax.jit,
    static_argnames=("kernel_size", "dilation", "eps", "compute_dtype",
                     "max_time_tile"))
def tdnn_block(x, weight, bias, gamma, beta, *, kernel_size, dilation,
               eps=1e-5, compute_dtype=jnp.float32, max_time_tile=512):
    """TDNNBlock forward.  x: (B, C_in, T) f32 -> (B, C_out, T) f32."""
    B, C_in, T = x.shape
    C_out, C_in_w, K = weight.shape
    assert C_in_w == C_in and K == kernel_size
    if K % 2 == 0:
        raise ValueError(
            "kernel_size must be odd for speechbrain 'same' padding")
    pad = dilation * (K - 1) // 2
    KC = K * C_in

    # ---- time tiling: full T if it fits, else lane-dense multiples of 128 ---
    if T <= max_time_tile:
        t_tile = T
    else:
        t_tile = max(128, (max_time_tile // 128) * 128)
    n_t = pl.cdiv(T, t_tile)
    T_ceil = n_t * t_tile
    extra = T_ceil - T
    T_halo = T_ceil + 2 * pad

    # ---- glue: y / output never change layout; only x is transposed once ----
    x_tc = jnp.transpose(x, (0, 2, 1)).astype(compute_dtype)      # (B, T, C_in)
    x_tc = jnp.pad(x_tc, ((0, 0), (pad, pad), (0, 0)), mode="reflect")
    if extra > 0:                               # round T up to the tile grid
        x_tc = jnp.pad(x_tc, ((0, 0), (0, extra), (0, 0)))
    w_flat = (jnp.transpose(weight, (0, 2, 1))                    # (C_out,K,C_in)
              .reshape(C_out, KC).astype(compute_dtype))
    b_col = bias.astype(jnp.float32).reshape(C_out, 1)

    # ---- pass 1: conv + bias + ReLU + partial BN stats, grid (B, time) ------
    cd = jnp.dtype(compute_dtype).itemsize
    conv_bytes = (2 * (T_halo * C_in * cd + C_out * KC * cd + C_out * 4
                       + C_out * t_tile * 4 + C_out * 2 * 4)
                  + t_tile * KC * cd)
    y, stats = pl.pallas_call(
        functools.partial(_conv_relu_stats_kernel, K=K, dilation=dilation,
                          C_in=C_in, t_tile=t_tile, T_valid=T),
        grid=(B, n_t),
        in_specs=[
            # Full padded slab per batch; index map ignores t, so it is DMA'd
            # once per batch element and reused across all its time tiles.
            pl.BlockSpec((None, T_halo, C_in), lambda b, t: (b, 0, 0)),
            # Grid-invariant weight / bias blocks (fetched once).
            pl.BlockSpec((C_out, KC), lambda b, t: (0, 0)),
            pl.BlockSpec((C_out, 1), lambda b, t: (0, 0)),
        ],
        out_specs=[
            pl.BlockSpec((None, C_out, t_tile), lambda b, t: (b, 0, t)),
            pl.BlockSpec((None, None, C_out, 2), lambda b, t: (b, t, 0, 0)),
        ],
        out_shape=[
            jax.ShapeDtypeStruct((B, C_out, T_ceil), jnp.float32),
            jax.ShapeDtypeStruct((B, n_t, C_out, 2), jnp.float32),
        ],
        scratch_shapes=[pltpu.VMEM((t_tile, KC), compute_dtype)],
        compiler_params=pltpu.CompilerParams(
            dimension_semantics=("parallel", "parallel"),
            vmem_limit_bytes=_vmem_limit(conv_bytes)),
    )(x_tc, w_flat, b_col)

    # ---- tiny stats reduction + BN scale/shift in plain JAX -----------------
    totals = jnp.sum(stats, axis=(0, 1))                     # (C_out, 2)
    count = float(B * T)
    mean = totals[:, 0] / count
    var = jnp.maximum(totals[:, 1] / count - mean * mean, 0.0)   # biased var
    inv_std = lax.rsqrt(var + eps)
    scale = (gamma * inv_std).reshape(C_out, 1).astype(jnp.float32)
    shift = (beta - mean * gamma * inv_std).reshape(C_out, 1).astype(jnp.float32)

    # ---- pass 2: tiled, fully parallel BatchNorm apply (in place over y) ----
    bn_bytes = 2 * (2 * C_out * t_tile * 4 + 2 * C_out * 4)
    out = pl.pallas_call(
        _bn_apply_kernel,
        grid=(B, n_t),
        in_specs=[
            pl.BlockSpec((None, C_out, t_tile), lambda b, t: (b, 0, t)),
            pl.BlockSpec((C_out, 1), lambda b, t: (0, 0)),
            pl.BlockSpec((C_out, 1), lambda b, t: (0, 0)),
        ],
        out_specs=pl.BlockSpec((None, C_out, t_tile), lambda b, t: (b, 0, t)),
        out_shape=jax.ShapeDtypeStruct((B, C_out, T_ceil), jnp.float32),
        input_output_aliases={0: 0},          # reuse y's HBM buffer for out
        compiler_params=pltpu.CompilerParams(
            dimension_semantics=("parallel", "parallel"),
            vmem_limit_bytes=_vmem_limit(bn_bytes)),
    )(y, scale, shift)

    if extra > 0:
        out = out[:, :, :T]
    return out


# ----------------------------- pure-JAX reference ----------------------------


def tdnn_block_ref(x, weight, bias, gamma, beta, kernel_size, dilation,
                   eps=1e-5):
    K = kernel_size
    pad = dilation * (K - 1) // 2
    x_pad = jnp.pad(x, ((0, 0), (0, 0), (pad, pad)), mode="reflect")
    y = lax.conv_general_dilated(
        x_pad, weight, window_strides=(1,), padding="VALID",
        rhs_dilation=(dilation,), dimension_numbers=("NCH", "OIH", "NCH"),
        precision=lax.Precision.HIGHEST)
    y = jnp.maximum(y + bias[None, :, None], 0.0)
    mean = jnp.mean(y, axis=(0, 2), keepdims=True)
    var = jnp.mean((y - mean) ** 2, axis=(0, 2), keepdims=True)
    y_n = (y - mean) * lax.rsqrt(var + eps)
    return y_n * gamma[None, :, None] + beta[None, :, None]


# ----------------------------- main -------------------------------------------


if __name__ == "__main__":
    # Small, fast demo case: multi-tile + ragged T (exercises tile masking,
    # the stats reduction and the tail slice).
    B, C_in, C_out, T, K, dilation = 2, 8, 16, 160, 3, 2

    key = jax.random.PRNGKey(0)
    k1, k2, k3, k4, k5 = jax.random.split(key, 5)
    x = jax.random.normal(k1, (B, C_in, T), jnp.float32)
    weight = 0.2 * jax.random.normal(k2, (C_out, C_in, K), jnp.float32)
    bias = 0.1 * jax.random.normal(k3, (C_out,), jnp.float32)
    gamma = 1.0 + 0.1 * jax.random.normal(k4, (C_out,), jnp.float32)
    beta = 0.1 * jax.random.normal(k5, (C_out,), jnp.float32)

    out = tdnn_block(x, weight, bias, gamma, beta, kernel_size=K,
                     dilation=dilation, compute_dtype=jnp.float32,
                     max_time_tile=128)
    out = jax.block_until_ready(out)
    assert out.shape == (B, C_out, T), out.shape

    ref = tdnn_block_ref(x, weight, bias, gamma, beta, K, dilation)
    max_err = float(jnp.max(jnp.abs(out - ref)))
    assert jnp.allclose(out, ref, atol=2e-3, rtol=2e-3), max_err

    print("KERNEL_OK")
</pallas_src>

<mosaic_0001>
module attributes {stable_mosaic.version = 11 : i64} {
  func.func @_conv_relu_stats_kernel(%arg0: i32, %arg1: i32, %arg2: memref<1x260x8xf32, #tpu.memory_space<vmem>>, %arg3: memref<16x24xf32, #tpu.memory_space<vmem>>, %arg4: memref<16x1xf32, #tpu.memory_space<vmem>>, %arg5: memref<1x16x128xf32, #tpu.memory_space<vmem>>, %arg6: memref<1x1x16x2xf32, #tpu.memory_space<vmem>>, %arg7: memref<128x24xf32, #tpu.memory_space<vmem>>) attributes {dimension_semantics = [#tpu.dimension_semantics<parallel>, #tpu.dimension_semantics<parallel>], iteration_bounds = array<i64: 2, 2>, scalar_prefetch = 0 : i64, scratch_operands = 1 : i64, tpu.core_type = #tpu.core_type<tc>, window_params = [{transform_indices = @transform_0, window_bounds = array<i64: 1, 260, 8>}, {pipeline_mode = #tpu.pipeline_mode<synchronous>, transform_indices = @transform_1, window_bounds = array<i64: 16, 24>}, {pipeline_mode = #tpu.pipeline_mode<synchronous>, transform_indices = @transform_2, window_bounds = array<i64: 16, 1>}, {transform_indices = @transform_3, window_bounds = array<i64: 1, 16, 128>}, {transform_indices = @transform_4, window_bounds = array<i64: 1, 1, 16, 2>}]} {
    %c128_i32 = arith.constant 128 : i32
    %0 = arith.muli %arg1, %c128_i32 : i32
    %1 = tpu.assume_multiple %0, 8 : i32
    %c0_i32 = arith.constant 0 : i32
    %2 = arith.addi %1, %c0_i32 : i32
    %c0 = arith.constant 0 : index
    %3 = arith.index_cast %2 : i32 to index
    %c0_0 = arith.constant 0 : index
    %4 = vector.load %arg2[%c0, %3, %c0_0] : memref<1x260x8xf32, #tpu.memory_space<vmem>>, vector<1x128x8xf32>
    %5 = vector.shape_cast %4 : vector<1x128x8xf32> to vector<128x8xf32>
    %c0_1 = arith.constant 0 : index
    %c0_2 = arith.constant 0 : index
    %6 = vector.load %arg7[%c0_1, %c0_2] : memref<128x24xf32, #tpu.memory_space<vmem>>, vector<128x8xf32>
    tpu.vector_store %arg7[%c0_1, %c0_2], %5 {strides = array<i32>} : memref<128x24xf32, #tpu.memory_space<vmem>>, vector<128x8xf32>,
    %c2_i32 = arith.constant 2 : i32
    %7 = arith.addi %1, %c2_i32 : i32
    %c0_3 = arith.constant 0 : index
    %8 = arith.index_cast %7 : i32 to index
    %c0_4 = arith.constant 0 : index
    %9 = vector.load %arg2[%c0_3, %8, %c0_4] : memref<1x260x8xf32, #tpu.memory_space<vmem>>, vector<1x128x8xf32>
    %10 = vector.shape_cast %9 : vector<1x128x8xf32> to vector<128x8xf32>
    %c0_5 = arith.constant 0 : index
    %c8 = arith.constant 8 : index
    %11 = vector.load %arg7[%c0_5, %c8] : memref<128x24xf32, #tpu.memory_space<vmem>>, vector<128x8xf32>
    tpu.vector_store %arg7[%c0_5, %c8], %10 {strides = array<i32>} : memref<128x24xf32, #tpu.memory_space<vmem>>, vector<128x8xf32>,
    %c4_i32 = arith.constant 4 : i32
    %12 = arith.addi %1, %c4_i32 : i32
    %c0_6 = arith.constant 0 : index
    %13 = arith.index_cast %12 : i32 to index
    %c0_7 = arith.constant 0 : index
    %14 = vector.load %arg2[%c0_6, %13, %c0_7] : memref<1x260x8xf32, #tpu.memory_space<vmem>>, vector<1x128x8xf32>
    %15 = vector.shape_cast %14 : vector<1x128x8xf32> to vector<128x8xf32>
    %c0_8 = arith.constant 0 : index
    %c16 = arith.constant 16 : index
    %16 = vector.load %arg7[%c0_8, %c16] : memref<128x24xf32, #tpu.memory_space<vmem>>, vector<128x8xf32>
    tpu.vector_store %arg7[%c0_8, %c16], %15 {strides = array<i32>} : memref<128x24xf32, #tpu.memory_space<vmem>>, vector<128x8xf32>,
    %c0_9 = arith.constant 0 : index
    %c0_10 = arith.constant 0 : index
    %17 = vector.load %arg3[%c0_9, %c0_10] : memref<16x24xf32, #tpu.memory_space<vmem>>, vector<16x24xf32>
    %c0_11 = arith.constant 0 : index
    %c0_12 = arith.constant 0 : index
    %18 = vector.load %arg7[%c0_11, %c0_12] : memref<128x24xf32, #tpu.memory_space<vmem>>, vector<128x24xf32>
    %cst = arith.constant dense<0.000000e+00> : vector<16x128xf32>
    %19 = tpu.matmul %17, %18, %cst {dimension_numbers = #tpu.dot_dimension_numbers<[1], [1], [0], [0], [0, 0, 1, 0], [], []>} : vector<16x24xf32>, vector<128x24xf32>, vector<16x128xf32> -> vector<16x128xf32>
    %c0_13 = arith.constant 0 : index
    %c0_14 = arith.constant 0 : index
    %20 = vector.load %arg4[%c0_13, %c0_14] : memref<16x1xf32, #tpu.memory_space<vmem>>, vector<16x1xf32>
    %21 = vector.broadcast %20 : vector<16x1xf32> to vector<16x128xf32>
    %22 = arith.addf %19, %21 : vector<16x128xf32>
    %cst_15 = arith.constant 0.000000e+00 : f32
    %23 = vector.broadcast %cst_15 : f32 to vector<16x128xf32>
    %24 = arith.maximumf %22, %23 : vector<16x128xf32>
    %c0_16 = arith.constant 0 : index
    %c0_17 = arith.constant 0 : index
    %c0_18 = arith.constant 0 : index
    %25 = vector.load %arg5[%c0_16, %c0_17, %c0_18] : memref<1x16x128xf32, #tpu.memory_space<vmem>>, vector<1x16x128xf32>
    %26 = vector.shape_cast %25 : vector<1x16x128xf32> to vector<16x128xf32>
    %27 = vector.shape_cast %24 : vector<16x128xf32> to vector<1x16x128xf32>
    tpu.vector_store %arg5[%c0_16, %c0_17, %c0_18], %27 {strides = array<i32>} : memref<1x16x128xf32, #tpu.memory_space<vmem>>, vector<1x16x128xf32>,
    %28 = tpu.iota {dimensions = array<i32: 1>} : vector<16x128xi32>
    %29 = vector.broadcast %1 : i32 to vector<16x128xi32>
    %30 = arith.addi %29, %28 : vector<16x128xi32>
    %c160_i32 = arith.constant 160 : i32
    %31 = vector.broadcast %c160_i32 : i32 to vector<16x128xi32>
    %32 = arith.cmpi slt, %30, %31 : vector<16x128xi32>
    %cst_19 = arith.constant 0.000000e+00 : f32
    %33 = vector.broadcast %cst_19 : f32 to vector<16x128xf32>
    %34 = arith.select %32, %24, %33 : vector<16x128xi1>, vector<16x128xf32>
    %cst_20 = arith.constant dense<0.000000e+00> : vector<16xf32>
    %35 = vector.multi_reduction <add>, %34, %cst_20 [1] : vector<16x128xf32> to vector<16xf32>
    %36 = vector.shape_cast %35 : vector<16xf32> to vector<16x1xf32>
    %37 = arith.mulf %34, %34 : vector<16x128xf32>
    %cst_21 = arith.constant dense<0.000000e+00> : vector<16xf32>
    %38 = vector.multi_reduction <add>, %37, %cst_21 [1] : vector<16x128xf32> to vector<16xf32>
    %39 = vector.shape_cast %38 : vector<16xf32> to vector<16x1xf32>
    %40 = tpu.concatenate %36, %39 in 1 : vector<16x1xf32>, vector<16x1xf32> -> vector<16x2xf32>
    %c0_22 = arith.constant 0 : index
    %c0_23 = arith.constant 0 : index
    %c0_24 = arith.constant 0 : index
    %c0_25 = arith.constant 0 : index
    %41 = vector.load %arg6[%c0_22, %c0_23, %c0_24, %c0_25] : memref<1x1x16x2xf32, #tpu.memory_space<vmem>>, vector<1x1x16x2xf32>
    %42 = vector.shape_cast %41 : vector<1x1x16x2xf32> to vector<16x2xf32>
    %43 = vector.shape_cast %40 : vector<16x2xf32> to vector<1x1x16x2xf32>
    tpu.vector_store %arg6[%c0_22, %c0_23, %c0_24, %c0_25], %43 {strides = array<i32>} : memref<1x1x16x2xf32, #tpu.memory_space<vmem>>, vector<1x1x16x2xf32>,
    return
  }
  func.func @transform_0(%arg0: i32, %arg1: i32) -> (i32, i32, i32) {
    %c0_i32 = arith.constant 0 : i32
    %c0_i32_0 = arith.constant 0 : i32
    %c0_i32_1 = arith.constant 0 : i32
    return %arg0, %c0_i32, %c0_i32_0 : i32, i32, i32
  }
  func.func @transform_1(%arg0: i32, %arg1: i32) -> (i32, i32) {
    %c0_i32 = arith.constant 0 : i32
    %c0_i32_0 = arith.constant 0 : i32
    %c0_i32_1 = arith.constant 0 : i32
    return %c0_i32, %c0_i32_0 : i32, i32
  }
  func.func @transform_2(%arg0: i32, %arg1: i32) -> (i32, i32) {
    %c0_i32 = arith.constant 0 : i32
    %c0_i32_0 = arith.constant 0 : i32
    %c0_i32_1 = arith.constant 0 : i32
    return %c0_i32, %c0_i32_0 : i32, i32
  }
  func.func @transform_3(%arg0: i32, %arg1: i32) -> (i32, i32, i32) {
    %c0_i32 = arith.constant 0 : i32
    %c0_i32_0 = arith.constant 0 : i32
    return %arg0, %c0_i32, %arg1 : i32, i32, i32
  }
  func.func @transform_4(%arg0: i32, %arg1: i32) -> (i32, i32, i32, i32) {
    %c0_i32 = arith.constant 0 : i32
    %c0_i32_0 = arith.constant 0 : i32
    %c0_i32_1 = arith.constant 0 : i32
    return %arg0, %arg1, %c0_i32, %c0_i32_0 : i32, i32, i32, i32
  }
}

module attributes {stable_mosaic.version = 11 : i64} {
  func.func @_bn_apply_kernel(%arg0: i32, %arg1: i32, %arg2: memref<1x16x128xf32, #tpu.memory_space<vmem>>, %arg3: memref<16x1xf32, #tpu.memory_space<vmem>>, %arg4: memref<16x1xf32, #tpu.memory_space<vmem>>, %arg5: memref<1x16x128xf32, #tpu.memory_space<vmem>>) attributes {dimension_semantics = [#tpu.dimension_semantics<parallel>, #tpu.dimension_semantics<parallel>], iteration_bounds = array<i64: 2, 2>, scalar_prefetch = 0 : i64, scratch_operands = 0 : i64, tpu.core_type = #tpu.core_type<tc>, window_params = [{transform_indices = @transform_0, window_bounds = array<i64: 1, 16, 128>}, {pipeline_mode = #tpu.pipeline_mode<synchronous>, transform_indices = @transform_1, window_bounds = array<i64: 16, 1>}, {pipeline_mode = #tpu.pipeline_mode<synchronous>, transform_indices = @transform_2, window_bounds = array<i64: 16, 1>}, {transform_indices = @transform_3, window_bounds = array<i64: 1, 16, 128>}]} {
    %c0 = arith.constant 0 : index
    %c0_0 = arith.constant 0 : index
    %c0_1 = arith.constant 0 : index
    %0 = vector.load %arg2[%c0, %c0_0, %c0_1] : memref<1x16x128xf32, #tpu.memory_space<vmem>>, vector<1x16x128xf32>
    %1 = vector.shape_cast %0 : vector<1x16x128xf32> to vector<16x128xf32>
    %c0_2 = arith.constant 0 : index
    %c0_3 = arith.constant 0 : index
    %2 = vector.load %arg3[%c0_2, %c0_3] : memref<16x1xf32, #tpu.memory_space<vmem>>, vector<16x1xf32>
    %3 = vector.broadcast %2 : vector<16x1xf32> to vector<16x128xf32>
    %4 = arith.mulf %1, %3 : vector<16x128xf32>
    %c0_4 = arith.constant 0 : index
    %c0_5 = arith.constant 0 : index
    %5 = vector.load %arg4[%c0_4, %c0_5] : memref<16x1xf32, #tpu.memory_space<vmem>>, vector<16x1xf32>
    %6 = vector.broadcast %5 : vector<16x1xf32> to vector<16x128xf32>
    %7 = arith.addf %4, %6 : vector<16x128xf32>
    %c0_6 = arith.constant 0 : index
    %c0_7 = arith.constant 0 : index
    %c0_8 = arith.constant 0 : index
    %8 = vector.load %arg5[%c0_6, %c0_7, %c0_8] : memref<1x16x128xf32, #tpu.memory_space<vmem>>, vector<1x16x128xf32>
    %9 = vector.shape_cast %8 : vector<1x16x128xf32> to vector<16x128xf32>
    %10 = vector.shape_cast %7 : vector<16x128xf32> to vector<1x16x128xf32>
    tpu.vector_store %arg5[%c0_6, %c0_7, %c0_8], %10 {strides = array<i32>} : memref<1x16x128xf32, #tpu.memory_space<vmem>>, vector<1x16x128xf32>,
    return
  }
  func.func @transform_0(%arg0: i32, %arg1: i32) -> (i32, i32, i32) {
    %c0_i32 = arith.constant 0 : i32
    %c0_i32_0 = arith.constant 0 : i32
    return %arg0, %c0_i32, %arg1 : i32, i32, i32
  }
  func.func @transform_1(%arg0: i32, %arg1: i32) -> (i32, i32) {
    %c0_i32 = arith.constant 0 : i32
    %c0_i32_0 = arith.constant 0 : i32
    %c0_i32_1 = arith.constant 0 : i32
    return %c0_i32, %c0_i32_0 : i32, i32
  }
  func.func @transform_2(%arg0: i32, %arg1: i32) -> (i32, i32) {
    %c0_i32 = arith.constant 0 : i32
    %c0_i32_0 = arith.constant 0 : i32
    %c0_i32_1 = arith.constant 0 : i32
    return %c0_i32, %c0_i32_0 : i32, i32
  }
  func.func @transform_3(%arg0: i32, %arg1: i32) -> (i32, i32, i32) {
    %c0_i32 = arith.constant 0 : i32
    %c0_i32_0 = arith.constant 0 : i32
    return %arg0, %c0_i32, %arg1 : i32, i32, i32
  }
}

</mosaic_0001>

<llo_original>
// kernel: tdnn_block.3
$region0: #{tdnn_block.3}
  #allocation0 [shape = 'u32[]', space=smem, size = 0x4, offset = 0x4, fixed_abs, tag = 'smem constant byte address 0x4 - core index']
  #allocation1 [shape = 'u32[144,128]{1,0:T(1,128)}', space=vmem, size = 0x12000, scoped, tag = 'internal scratch']
  %s0 = inlined_call_operand.vmem [shape: f32[2,16,256], index: 0, kind: input, shape index: {}, may-alias: {0,3}]
  %s1 = inlined_call_operand.vmem [shape: f32[16,1], index: 1, kind: input, shape index: {}]
  %s2 = inlined_call_operand.vmem [shape: f32[16,1], index: 2, kind: input, shape index: {}]
  %s3 = inlined_call_operand.vmem [shape: f32[2,16,256], index: 3, kind: output, shape index: {}, may-alias: {0,3}]
  %s4 = sld [smem:[#allocation0]]
  $region117: #{tdnn_block.3} parent=0
    _
  %s6 = ssub.s32 1, %s4
  %s7 = scalar_select 0, %s6, %s4
  $region1: #{tdnn_block.3} parent=0
    #allocation2 [shape = 'u8[16384]{0}', space=vmem, size = 0x4000, scoped, tag = 'input window, operand 0']
    #allocation3 [shape = 'u8[16384]{0}', space=vmem, size = 0x4000, scoped, tag = 'output window, operand 0']
    loop: start=0, step=1, limit=6
    $region2: #{tdnn_block.3} parent=1 // loop_pre_header
      _
    $region3: #{tdnn_block.3} parent=1 // loop_header
      %s9 = sphi 0, %s13
      %p10 = scmp.ge.s32.totalorder %s9, 6
      %s16 = sphi 0, %s28
      %s17 = sphi 0, %s24
      %s18 = sphi 0, %s16
      %s19 = sphi 0, %s17
      %s20 = sphi 0, %s18
      %s21 = sphi 0, %s19
      %s33 = sphi 0, %s35
      %s36 = sphi 0, %s33
      %s37 = sphi 0, %s36
      %s53 = sphi 0, %s37
      %s57 = sphi 0, %s57
      %s59 = sphi 0, %s57
      %s60 = sphi 0, %s59
      %s74 = sphi 0, %s60
      %s78 = sphi 0, %s78
      %s80 = sphi 0, %s78
      %s81 = sphi 0, %s80
      %s95 = sphi 0, %s81
      %s103 = sphi 0, %s105
      %s106 = sphi 0, %s103
      %s107 = sphi 0, %s106
      %s123 = sphi 0, %s107
    $region4: #{tdnn_block.3} parent=1 // loop_header_branch
      %12 = sbr.rel (%p10) target = $region8
    $region5: #{tdnn_block.3} parent=1 // loop_body
      %s14 = ssub.s32 %s9, 1
      %s15 = ssub.s32 %s9, 2
      %s22 = sadd.s32 1, %s17
      %p23 = scmp.ge.s32.totalorder %s22, 2
      %s24 = scalar_select %p23, 0, %s22
      %s25 = sadd.s32 1, %s16
      %s26 = scalar_select %p23, %s25, %s16
      %p27 = scmp.ge.s32.totalorder %s26, 2
      %s28 = scalar_select %p27, 0, %s26
      %s29 = ssub.s32 %s16, %s28
      %s30 = ssub.s32 %s17, %s24
      %s31 = sor.u32 %s29, %s30
      %p32 = scmp.eq.s32.totalorder %s31, 0
      %s34 = sadd.s32 %s33, 1
      %s35 = scalar_select %p32, %s33, %s34
      %p38 = pneg %p32
      %p39 = scmp.eq.s32.totalorder %s9, 3
      %p40 = por %p38, %p39
      %p41 = scmp.ne.s32.totalorder %s33, %s36
      %p42 = scmp.eq.s32.totalorder %s9, 0
      %p43 = por %p41, %p42
      %p44 = scmp.ne.s32.totalorder %s33, %s36
      %p45 = scmp.eq.s32.totalorder %s14, 3
      %p46 = por %p44, %p45
      %p47 = scmp.ne.s32.totalorder %s36, %s37
      %p48 = scmp.eq.s32.totalorder %s14, 0
      %p49 = por %p47, %p48
      %p50 = scmp.ne.s32.totalorder %s36, %s37
      %p51 = scmp.eq.s32.totalorder %s15, 3
      %p52 = por %p50, %p51
      %p54 = scmp.ne.s32.totalorder %s37, %s53
      %p55 = scmp.eq.s32.totalorder %s15, 0
      %p56 = por %p54, %p55
      %s58 = sadd.s32 %s57, 1
      %p61 = scmp.eq.s32.totalorder %s9, 3
      %p62 = scmp.ne.s32.totalorder %s57, %s59
      %p63 = scmp.eq.s32.totalorder %s9, 0
      %p64 = por %p62, %p63
      %p65 = scmp.ne.s32.totalorder %s57, %s59
      %p66 = scmp.eq.s32.totalorder %s14, 3
      %p67 = por %p65, %p66
      %p68 = scmp.ne.s32.totalorder %s59, %s60
      %p69 = scmp.eq.s32.totalorder %s14, 0
      %p70 = por %p68, %p69
      %p71 = scmp.ne.s32.totalorder %s59, %s60
      %p72 = scmp.eq.s32.totalorder %s15, 3
      %p73 = por %p71, %p72
      %p75 = scmp.ne.s32.totalorder %s60, %s74
      %p76 = scmp.eq.s32.totalorder %s15, 0
      %p77 = por %p75, %p76
      %s79 = sadd.s32 %s78, 1
      %p82 = scmp.eq.s32.totalorder %s9, 3
      %p83 = scmp.ne.s32.totalorder %s78, %s80
      %p84 = scmp.eq.s32.totalorder %s9, 0
      %p85 = por %p83, %p84
      %p86 = scmp.ne.s32.totalorder %s78, %s80
      %p87 = scmp.eq.s32.totalorder %s14, 3
      %p88 = por %p86, %p87
      %p89 = scmp.ne.s32.totalorder %s80, %s81
      %p90 = scmp.eq.s32.totalorder %s14, 0
      %p91 = por %p89, %p90
      %p92 = scmp.ne.s32.totalorder %s80, %s81
      %p93 = scmp.eq.s32.totalorder %s15, 3
      %p94 = por %p92, %p93
      %p96 = scmp.ne.s32.totalorder %s81, %s95
      %p97 = scmp.eq.s32.totalorder %s15, 0
      %p98 = por %p96, %p97
      %s99 = ssub.s32 %s16, %s28
      %s100 = ssub.s32 %s17, %s24
      %s101 = sor.u32 %s99, %s100
      %p102 = scmp.eq.s32.totalorder %s101, 0
      %s104 = sadd.s32 %s103, 1
      %s105 = scalar_select %p102, %s103, %s104
      %p108 = pneg %p102
      %p109 = scmp.eq.s32.totalorder %s9, 3
      %p110 = por %p108, %p109
      %p111 = scmp.ne.s32.totalorder %s103, %s106
      %p112 = scmp.eq.s32.totalorder %s9, 0
      %p113 = por %p111, %p112
      %p114 = scmp.ne.s32.totalorder %s103, %s106
      %p115 = scmp.eq.s32.totalorder %s14, 3
      %p116 = por %p114, %p115
      %p117 = scmp.ne.s32.totalorder %s106, %s107
      %p118 = scmp.eq.s32.totalorder %s14, 0
      %p119 = por %p117, %p118
      %p120 = scmp.ne.s32.totalorder %s106, %s107
      %p121 = scmp.eq.s32.totalorder %s15, 3
      %p122 = por %p120, %p121
      %p124 = scmp.ne.s32.totalorder %s107, %s123
      %p125 = scmp.eq.s32.totalorder %s15, 0
      %p126 = por %p124, %p125
      %p127 = scmp.le.s32.totalorder 1, %s9
      %p128 = scmp.lt.s32.totalorder %s9, 5
      %p129 = pnand %p127, %p128
      %p130 = pneg %p129
      // Predicated region
      $region9: #{tdnn_block.3} parent=5 // pred_check
        _
      $region10: #{tdnn_block.3} parent=5 // pred_check_branch
        %132 = sbr.rel (%p129) target = $region12
      $region11: #{tdnn_block.3} parent=5 // pred_region
        %s133 = ssub.s32 %s9, 1
        // Predicated region
        $region13: #{tdnn_block.3} parent=11 // pred_check
          %p134 = pneg %p70
        $region14: #{tdnn_block.3} parent=11 // pred_check_branch
          %136 = sbr.rel (%p134) target = $region16
        $region15: #{tdnn_block.3} parent=11 // pred_region
          _
        $region16: #{tdnn_block.3} parent=11 // pred_fallthru
          _
        // Predicated region
        $region17: #{tdnn_block.3} parent=11 // pred_check
          %p137 = pneg %p91
        $region18: #{tdnn_block.3} parent=11 // pred_check_branch
          %139 = sbr.rel (%p137) target = $region20
        $region19: #{tdnn_block.3} parent=11 // pred_region
          _
        $region20: #{tdnn_block.3} parent=11 // pred_fallthru
          _
      $region12: #{tdnn_block.3} parent=5 // pred_fallthru
        _
      %p140 = scmp.lt.s32.totalorder %s9, 4
      // Predicated region
      $region21: #{tdnn_block.3} parent=5 // pred_check
        %p141 = pneg %p140
      $region22: #{tdnn_block.3} parent=5 // pred_check_branch
        %143 = sbr.rel (%p141) target = $region24
      $region23: #{tdnn_block.3} parent=5 // pred_region
        // Predicated region
        $region25: #{tdnn_block.3} parent=23 // pred_check
          %p144 = pneg %p43
        $region26: #{tdnn_block.3} parent=23 // pred_check_branch
          %146 = sbr.rel (%p144) target = $region28
        $region27: #{tdnn_block.3} parent=23 // pred_region
          %s147 = sand.u32 %s33, 1
          %s148 = sand.u32 %s33, 1
          %s149 = smul.addr %s148, 16
          %s150 = scalar_lea.vmem [#allocation2], %s149
          %s151 = smul.addr %s16, 4
          %s152 = sadd.s32 %s17, %s151
          %s153 = smul.addr %s152, 8
          %s154 = scalar_lea.vmem %s0, %s153
          // Predicated region
          $region29: #{tdnn_block.3} parent=27 // pred_check
            _
          $region30: #{tdnn_block.3} parent=27 // pred_check_branch
            %156 = sbr.rel (0) target = $region32
          $region31: #{tdnn_block.3} parent=27 // pred_region
            // Predicated region
            $region33: #{tdnn_block.3} parent=31 // pred_check
              _
            $region34: #{tdnn_block.3} parent=31 // pred_check_branch
              %158 = sbr.rel (0) target = $region36
            $region35: #{tdnn_block.3} parent=31 // pred_region
              // Predicated region
              $region48: #{tdnn_block.3} parent=35 // pred_check
                _
              $region49: #{tdnn_block.3} parent=35 // pred_check_branch
                %176 = sbr.rel (0) target = $region51
              $region50: #{tdnn_block.3} parent=35 // pred_region
                loop: start=0, step=1, limit=1
                $region52: #{tdnn_block.3} parent=50 // loop_pre_header
                  _
                $region53: #{tdnn_block.3} parent=50 // loop_header
                  %s178 = sphi 0, %s182
                  %p179 = scmp.ge.s32.totalorder %s178, 1
                  %s183 = sphi %s154, %s154
                  %s184 = sphi %s150, %s150
                $region54: #{tdnn_block.3} parent=50 // loop_header_branch
                  %181 = sbr.rel (%p179) target = $region58
                $region55: #{tdnn_block.3} parent=50 // loop_body
                  %v185 = vld [vmem:[%s183] sm:$0xff]
                  %186 = vst [vmem:[%s184] sm:$0xff] %v185
                  %v187 = vld [vmem:[%s183 + $0x10] sm:$0xff]
                  %188 = vst [vmem:[%s184 + $0x8] sm:$0xff] %v187
                $region56: #{tdnn_block.3} parent=50 // loop_footer
                  %s182 = sadd.s32 1, %s178
                $region57: #{tdnn_block.3} parent=50 // loop_footer_branch
                  %177 = sbr.rel target = $region53
                $region58: #{tdnn_block.3} parent=50 // loop_exit
                  _
              $region51: #{tdnn_block.3} parent=35 // pred_fallthru
                _
              // Predicated region
              $region59: #{tdnn_block.3} parent=35 // pred_check
                _
              $region60: #{tdnn_block.3} parent=35 // pred_check_branch
                %190 = sbr.rel target = $region62
              $region61: #{tdnn_block.3} parent=35 // pred_region
                _
              $region62: #{tdnn_block.3} parent=35 // pred_fallthru
                _
            $region36: #{tdnn_block.3} parent=31 // pred_fallthru
              _
            // Predicated region
            $region37: #{tdnn_block.3} parent=31 // pred_check
              _
            $region38: #{tdnn_block.3} parent=31 // pred_check_branch
              %160 = sbr.rel target = $region40
            $region39: #{tdnn_block.3} parent=31 // pred_region
              %s162 = ssub.s32 256, 1
              loop: start=0, step=1, limit=1
              $region41: #{tdnn_block.3} parent=39 // loop_pre_header
                _
              $region42: #{tdnn_block.3} parent=39 // loop_header
                %s164 = sphi 0, %s168
                %p165 = scmp.ge.s32.totalorder %s164, 1
                %s169 = sphi %s154, %s154
                %s170 = sphi %s150, %s150
              $region43: #{tdnn_block.3} parent=39 // loop_header_branch
                %167 = sbr.rel (%p165) target = $region47
              $region44: #{tdnn_block.3} parent=39 // loop_body
                %v171 = vld [vmem:[%s169] sm:%s162]
                %172 = vst [vmem:[%s170] sm:%s162] %v171
                %v173 = vld [vmem:[%s169 + $0x10] sm:%s162]
                %174 = vst [vmem:[%s170 + $0x8] sm:%s162] %v173
              $region45: #{tdnn_block.3} parent=39 // loop_footer
                %s168 = sadd.s32 1, %s164
              $region46: #{tdnn_block.3} parent=39 // loop_footer_branch
                %163 = sbr.rel target = $region42
              $region47: #{tdnn_block.3} parent=39 // loop_exit
                _
            $region40: #{tdnn_block.3} parent=31 // pred_fallthru
              _
          $region32: #{tdnn_block.3} parent=27 // pred_fallthru
            _
          %191 = vnop
        $region28: #{tdnn_block.3} parent=23 // pred_fallthru
          _
      $region24: #{tdnn_block.3} parent=5 // pred_fallthru
        _
      %p192 = scmp.le.s32.totalorder 1, %s9
      %p193 = scmp.lt.s32.totalorder %s9, 5
      %p194 = pnand %p192, %p193
      %p195 = pneg %p194
      // Predicated region
      $region63: #{tdnn_block.3} parent=5 // pred_check
        _
      $region64: #{tdnn_block.3} parent=5 // pred_check_branch
        %197 = sbr.rel (%p194) target = $region66
      $region65: #{tdnn_block.3} parent=5 // pred_region
        %s198 = ssub.s32 %s9, 1
        %s199 = sand.u32 %s36, 1
        %s200 = sand.u32 %s36, 1
        %s201 = smul.addr %s200, 16
        %s202 = scalar_lea.vmem [#allocation2], %s201
        // Predicated region
        $region67: #{tdnn_block.3} parent=65 // pred_check
          %p203 = pneg %p49
        $region68: #{tdnn_block.3} parent=65 // pred_check_branch
          %205 = sbr.rel (%p203) target = $region70
        $region69: #{tdnn_block.3} parent=65 // pred_region
          _
        $region70: #{tdnn_block.3} parent=65 // pred_fallthru
          _
        %s206 = sand.u32 %s36, 1
        %s207 = sand.u32 %s36, 1
        %s208 = smul.addr %s207, 16
        %s209 = scalar_lea.vmem [#allocation2], %s208
        %p210 = pneg %p49
        %p211 = pneg %p46
        %p212 = pneg %p70
        %p213 = pneg %p67
        %p214 = pneg %p91
        %p215 = pneg %p88
        %p216 = pneg %p119
        %p217 = pneg %p116
        %s218 = sand.u32 %s106, 1
        %s219 = sand.u32 %s106, 1
        %s220 = smul.addr %s219, 16
        %s221 = scalar_lea.vmem [#allocation3], %s220
        %v222 = vld [vmem:[%s202] sm:$0xff]
        %v223 = vld [vmem:[%s202 + $0x8] sm:$0xff]
        %v224 = vld [vmem:[%s1] sm:$0xff]
        %v225 = vld [vmem:[%s1 + $0x8] sm:$0xff]
        %227 = vset.pattern.permute.xlu0 0
        %228 = vperm.xlu0 %227, %v224
        %v229 = vpop.permute.xlu0 %228
        %232 = vset.pattern.permute.xlu0 0
        %233 = vperm.xlu0 %232, %v225
        %v234 = vpop.permute.xlu0 %233
        %v236 = vmul.f32 %v222, %v229
        %v237 = vmul.f32 %v223, %v234
        %v238 = vld [vmem:[%s2] sm:$0xff]
        %v239 = vld [vmem:[%s2 + $0x8] sm:$0xff]
        %241 = vset.pattern.permute.xlu0 0
        %242 = vperm.xlu0 %241, %v238
        %v243 = vpop.permute.xlu0 %242
        %246 = vset.pattern.permute.xlu0 0
        %247 = vperm.xlu0 %246, %v239
        %v248 = vpop.permute.xlu0 %247
        %v250 = vadd.f32 %v236, %v243
        %v251 = vadd.f32 %v237, %v248
        %252 = vst [vmem:[%s221] sm:$0xff] %v250
        %253 = vst [vmem:[%s221 + $0x8] sm:$0xff] %v251
        %s254 = sand.u32 %s106, 1
        %s255 = sand.u32 %s106, 1
        %s256 = smul.addr %s255, 16
        %s257 = scalar_lea.vmem [#allocation3], %s256
        // Predicated region
        $region71: #{tdnn_block.3} parent=65 // pred_check
          %p258 = pneg %p116
        $region72: #{tdnn_block.3} parent=65 // pred_check_branch
          %260 = sbr.rel (%p258) target = $region74
        $region73: #{tdnn_block.3} parent=65 // pred_region
          %s261 = smul.addr %s18, 4
          %s262 = sadd.s32 %s19, %s261
          %s263 = smul.addr %s262, 8
          %s264 = scalar_lea.vmem %s3, %s263
          // Predicated region
          $region75: #{tdnn_block.3} parent=73 // pred_check
            _
          $region76: #{tdnn_block.3} parent=73 // pred_check_branch
            %266 = sbr.rel (0) target = $region78
          $region77: #{tdnn_block.3} parent=73 // pred_region
            // Predicated region
            $region79: #{tdnn_block.3} parent=77 // pred_check
              _
            $region80: #{tdnn_block.3} parent=77 // pred_check_branch
              %268 = sbr.rel (0) target = $region82
            $region81: #{tdnn_block.3} parent=77 // pred_region
              // Predicated region
              $region94: #{tdnn_block.3} parent=81 // pred_check
                _
              $region95: #{tdnn_block.3} parent=81 // pred_check_branch
                %286 = sbr.rel (0) target = $region97
              $region96: #{tdnn_block.3} parent=81 // pred_region
                loop: start=0, step=1, limit=1
                $region98: #{tdnn_block.3} parent=96 // loop_pre_header
                  _
                $region99: #{tdnn_block.3} parent=96 // loop_header
                  %s288 = sphi 0, %s292
                  %p289 = scmp.ge.s32.totalorder %s288, 1
                  %s293 = sphi %s257, %s257
                  %s294 = sphi %s264, %s264
                $region100: #{tdnn_block.3} parent=96 // loop_header_branch
                  %291 = sbr.rel (%p289) target = $region104
                $region101: #{tdnn_block.3} parent=96 // loop_body
                  %v295 = vld [vmem:[%s293] sm:$0xff]
                  %296 = vst [vmem:[%s294] sm:$0xff] %v295
                  %v297 = vld [vmem:[%s293 + $0x8] sm:$0xff]
                  %298 = vst [vmem:[%s294 + $0x10] sm:$0xff] %v297
                $region102: #{tdnn_block.3} parent=96 // loop_footer
                  %s292 = sadd.s32 1, %s288
                $region103: #{tdnn_block.3} parent=96 // loop_footer_branch
                  %287 = sbr.rel target = $region99
                $region104: #{tdnn_block.3} parent=96 // loop_exit
                  _
              $region97: #{tdnn_block.3} parent=81 // pred_fallthru
                _
              // Predicated region
              $region105: #{tdnn_block.3} parent=81 // pred_check
                _
              $region106: #{tdnn_block.3} parent=81 // pred_check_branch
                %300 = sbr.rel target = $region108
              $region107: #{tdnn_block.3} parent=81 // pred_region
                _
              $region108: #{tdnn_block.3} parent=81 // pred_fallthru
                _
            $region82: #{tdnn_block.3} parent=77 // pred_fallthru
              _
            // Predicated region
            $region83: #{tdnn_block.3} parent=77 // pred_check
              _
            $region84: #{tdnn_block.3} parent=77 // pred_check_branch
              %270 = sbr.rel target = $region86
            $region85: #{tdnn_block.3} parent=77 // pred_region
              %s272 = ssub.s32 256, 1
              loop: start=0, step=1, limit=1
              $region87: #{tdnn_block.3} parent=85 // loop_pre_header
                _
              $region88: #{tdnn_block.3} parent=85 // loop_header
                %s274 = sphi 0, %s278
                %p275 = scmp.ge.s32.totalorder %s274, 1
                %s279 = sphi %s257, %s257
                %s280 = sphi %s264, %s264
              $region89: #{tdnn_block.3} parent=85 // loop_header_branch
                %277 = sbr.rel (%p275) target = $region93
              $region90: #{tdnn_block.3} parent=85 // loop_body
                %v281 = vld [vmem:[%s279] sm:%s272]
                %282 = vst [vmem:[%s280] sm:%s272] %v281
                %v283 = vld [vmem:[%s279 + $0x8] sm:%s272]
                %284 = vst [vmem:[%s280 + $0x10] sm:%s272] %v283
              $region91: #{tdnn_block.3} parent=85 // loop_footer
                %s278 = sadd.s32 1, %s274
              $region92: #{tdnn_block.3} parent=85 // loop_footer_branch
                %273 = sbr.rel target = $region88
              $region93: #{tdnn_block.3} parent=85 // loop_exit
                _
            $region86: #{tdnn_block.3} parent=77 // pred_fallthru
              _
          $region78: #{tdnn_block.3} parent=73 // pred_fallthru
            _
          %301 = vnop
        $region74: #{tdnn_block.3} parent=65 // pred_fallthru
          _
      $region66: #{tdnn_block.3} parent=5 // pred_fallthru
        _
      %p302 = scmp.le.s32.totalorder 2, %s9
      // Predicated region
      $region109: #{tdnn_block.3} parent=5 // pred_check
        %p303 = pneg %p302
      $region110: #{tdnn_block.3} parent=5 // pred_check_branch
        %305 = sbr.rel (%p303) target = $region112
      $region111: #{tdnn_block.3} parent=5 // pred_region
        %s306 = ssub.s32 %s9, 2
        // Predicated region
        $region113: #{tdnn_block.3} parent=111 // pred_check
          %p307 = pneg %p122
        $region114: #{tdnn_block.3} parent=111 // pred_check_branch
          %309 = sbr.rel (%p307) target = $region116
        $region115: #{tdnn_block.3} parent=111 // pred_region
          %s310 = sand.u32 %s107, 1
          %s311 = sand.u32 %s107, 1
          %s312 = smul.addr %s311, 16
          %s313 = scalar_lea.vmem [#allocation3], %s312
        $region116: #{tdnn_block.3} parent=111 // pred_fallthru
          _
      $region112: #{tdnn_block.3} parent=5 // pred_fallthru
        _
    $region6: #{tdnn_block.3} parent=1 // loop_footer
      %s13 = sadd.s32 1, %s9
    $region7: #{tdnn_block.3} parent=1 // loop_footer_branch
      %8 = sbr.rel target = $region3
    $region8: #{tdnn_block.3} parent=1 // loop_exit
      _

// kernel: tdnn_block.2
$region0: #{tdnn_block.2}
  #allocation0 [shape = 'u32[]', space=smem, size = 0x4, offset = 0x4, fixed_abs, tag = 'smem constant byte address 0x4 - core index']
  #allocation1 [shape = 'u32[144,128]{1,0:T(1,128)}', space=vmem, size = 0x12000, scoped, tag = 'internal scratch']
  #allocation2 [shape = 'f32[128,24]{1,0:T(8,128)}', space=vmem, size = 0x10000, scoped, tag = 'scratch operand']
  %s0 = inlined_call_operand.vmem [shape: f32[2,260,8], index: 0, kind: input, shape index: {}]
  %s1 = inlined_call_operand.vmem [shape: f32[16,24], index: 1, kind: input, shape index: {}]
  %s2 = inlined_call_operand.vmem [shape: f32[16,1], index: 2, kind: input, shape index: {}]
  %s3 = inlined_call_operand.vmem [shape: f32[2,16,256], index: 3, kind: output, shape index: {0}]
  %s4 = inlined_call_operand.vmem [shape: f32[2,2,16,2], index: 4, kind: output, shape index: {1}]
  %5 = xla_tuple %s3, %s4
  %s6 = sld [smem:[#allocation0]]
  $region87: #{tdnn_block.2} parent=0
    _
  %s8 = ssub.s32 1, %s6
  %s9 = scalar_select 0, %s8, %s6
  $region1: #{tdnn_block.2} parent=0
    #allocation3 [shape = 'u8[16384]{0}', space=vmem, size = 0x4000, scoped, tag = 'output window, operand 0']
    loop: start=0, step=1, limit=6
    $region2: #{tdnn_block.2} parent=1 // loop_pre_header
      _
    $region3: #{tdnn_block.2} parent=1 // loop_header
      %s11 = sphi 0, %s15
      %p12 = scmp.ge.s32.totalorder %s11, 6
      %s18 = sphi 0, %s30
      %s19 = sphi 0, %s26
      %s20 = sphi 0, %s18
      %s21 = sphi 0, %s19
      %s22 = sphi 0, %s20
      %s23 = sphi 0, %s21
      %s33 = sphi 0, %s35
      %s36 = sphi 0, %s33
      %s37 = sphi 0, %s36
      %s53 = sphi 0, %s37
      %s57 = sphi 0, %s57
      %s59 = sphi 0, %s57
      %s60 = sphi 0, %s59
      %s74 = sphi 0, %s60
      %s78 = sphi 0, %s78
      %s80 = sphi 0, %s78
      %s81 = sphi 0, %s80
      %s95 = sphi 0, %s81
      %s103 = sphi 0, %s105
      %s106 = sphi 0, %s103
      %s107 = sphi 0, %s106
      %s123 = sphi 0, %s107
      %s131 = sphi 0, %s133
      %s134 = sphi 0, %s131
      %s135 = sphi 0, %s134
      %s151 = sphi 0, %s135
    $region4: #{tdnn_block.2} parent=1 // loop_header_branch
      %14 = sbr.rel (%p12) target = $region8
    $region5: #{tdnn_block.2} parent=1 // loop_body
      %s16 = ssub.s32 %s11, 1
      %s17 = ssub.s32 %s11, 2
      %s24 = sadd.s32 1, %s19
      %p25 = scmp.ge.s32.totalorder %s24, 2
      %s26 = scalar_select %p25, 0, %s24
      %s27 = sadd.s32 1, %s18
      %s28 = scalar_select %p25, %s27, %s18
      %p29 = scmp.ge.s32.totalorder %s28, 2
      %s30 = scalar_select %p29, 0, %s28
      %s31 = ssub.s32 %s18, %s30
      %p32 = scmp.eq.s32.totalorder %s31, 0
      %s34 = sadd.s32 %s33, 1
      %s35 = scalar_select %p32, %s33, %s34
      %p38 = pneg %p32
      %p39 = scmp.eq.s32.totalorder %s11, 3
      %p40 = por %p38, %p39
      %p41 = scmp.ne.s32.totalorder %s33, %s36
      %p42 = scmp.eq.s32.totalorder %s11, 0
      %p43 = por %p41, %p42
      %p44 = scmp.ne.s32.totalorder %s33, %s36
      %p45 = scmp.eq.s32.totalorder %s16, 3
      %p46 = por %p44, %p45
      %p47 = scmp.ne.s32.totalorder %s36, %s37
      %p48 = scmp.eq.s32.totalorder %s16, 0
      %p49 = por %p47, %p48
      %p50 = scmp.ne.s32.totalorder %s36, %s37
      %p51 = scmp.eq.s32.totalorder %s17, 3
      %p52 = por %p50, %p51
      %p54 = scmp.ne.s32.totalorder %s37, %s53
      %p55 = scmp.eq.s32.totalorder %s17, 0
      %p56 = por %p54, %p55
      %s58 = sadd.s32 %s57, 1
      %p61 = scmp.eq.s32.totalorder %s11, 3
      %p62 = scmp.ne.s32.totalorder %s57, %s59
      %p63 = scmp.eq.s32.totalorder %s11, 0
      %p64 = por %p62, %p63
      %p65 = scmp.ne.s32.totalorder %s57, %s59
      %p66 = scmp.eq.s32.totalorder %s16, 3
      %p67 = por %p65, %p66
      %p68 = scmp.ne.s32.totalorder %s59, %s60
      %p69 = scmp.eq.s32.totalorder %s16, 0
      %p70 = por %p68, %p69
      %p71 = scmp.ne.s32.totalorder %s59, %s60
      %p72 = scmp.eq.s32.totalorder %s17, 3
      %p73 = por %p71, %p72
      %p75 = scmp.ne.s32.totalorder %s60, %s74
      %p76 = scmp.eq.s32.totalorder %s17, 0
      %p77 = por %p75, %p76
      %s79 = sadd.s32 %s78, 1
      %p82 = scmp.eq.s32.totalorder %s11, 3
      %p83 = scmp.ne.s32.totalorder %s78, %s80
      %p84 = scmp.eq.s32.totalorder %s11, 0
      %p85 = por %p83, %p84
      %p86 = scmp.ne.s32.totalorder %s78, %s80
      %p87 = scmp.eq.s32.totalorder %s16, 3
      %p88 = por %p86, %p87
      %p89 = scmp.ne.s32.totalorder %s80, %s81
      %p90 = scmp.eq.s32.totalorder %s16, 0
      %p91 = por %p89, %p90
      %p92 = scmp.ne.s32.totalorder %s80, %s81
      %p93 = scmp.eq.s32.totalorder %s17, 3
      %p94 = por %p92, %p93
      %p96 = scmp.ne.s32.totalorder %s81, %s95
      %p97 = scmp.eq.s32.totalorder %s17, 0
      %p98 = por %p96, %p97
      %s99 = ssub.s32 %s18, %s30
      %s100 = ssub.s32 %s19, %s26
      %s101 = sor.u32 %s99, %s100
      %p102 = scmp.eq.s32.totalorder %s101, 0
      %s104 = sadd.s32 %s103, 1
      %s105 = scalar_select %p102, %s103, %s104
      %p108 = pneg %p102
      %p109 = scmp.eq.s32.totalorder %s11, 3
      %p110 = por %p108, %p109
      %p111 = scmp.ne.s32.totalorder %s103, %s106
      %p112 = scmp.eq.s32.totalorder %s11, 0
      %p113 = por %p111, %p112
      %p114 = scmp.ne.s32.totalorder %s103, %s106
      %p115 = scmp.eq.s32.totalorder %s16, 3
      %p116 = por %p114, %p115
      %p117 = scmp.ne.s32.totalorder %s106, %s107
      %p118 = scmp.eq.s32.totalorder %s16, 0
      %p119 = por %p117, %p118
      %p120 = scmp.ne.s32.totalorder %s106, %s107
      %p121 = scmp.eq.s32.totalorder %s17, 3
      %p122 = por %p120, %p121
      %p124 = scmp.ne.s32.totalorder %s107, %s123
      %p125 = scmp.eq.s32.totalorder %s17, 0
      %p126 = por %p124, %p125
      %s127 = ssub.s32 %s18, %s30
      %s128 = ssub.s32 %s19, %s26
      %s129 = sor.u32 %s127, %s128
      %p130 = scmp.eq.s32.totalorder %s129, 0
      %s132 = sadd.s32 %s131, 1
      %s133 = scalar_select %p130, %s131, %s132
      %p136 = pneg %p130
      %p137 = scmp.eq.s32.totalorder %s11, 3
      %p138 = por %p136, %p137
      %p139 = scmp.ne.s32.totalorder %s131, %s134
      %p140 = scmp.eq.s32.totalorder %s11, 0
      %p141 = por %p139, %p140
      %p142 = scmp.ne.s32.totalorder %s131, %s134
      %p143 = scmp.eq.s32.totalorder %s16, 3
      %p144 = por %p142, %p143
      %p145 = scmp.ne.s32.totalorder %s134, %s135
      %p146 = scmp.eq.s32.totalorder %s16, 0
      %p147 = por %p145, %p146
      %p148 = scmp.ne.s32.totalorder %s134, %s135
      %p149 = scmp.eq.s32.totalorder %s17, 3
      %p150 = por %p148, %p149
      %p152 = scmp.ne.s32.totalorder %s135, %s151
      %p153 = scmp.eq.s32.totalorder %s17, 0
      %p154 = por %p152, %p153
      %p155 = scmp.le.s32.totalorder 1, %s11
      %p156 = scmp.lt.s32.totalorder %s11, 5
      %p157 = pnand %p155, %p156
      %p158 = pneg %p157
      // Predicated region
      $region9: #{tdnn_block.2} parent=5 // pred_check
        _
      $region10: #{tdnn_block.2} parent=5 // pred_check_branch
        %160 = sbr.rel (%p157) target = $region12
      $region11: #{tdnn_block.2} parent=5 // pred_region
        %s161 = ssub.s32 %s11, 1
        // Predicated region
        $region13: #{tdnn_block.2} parent=11 // pred_check
          %p162 = pneg %p70
        $region14: #{tdnn_block.2} parent=11 // pred_check_branch
          %164 = sbr.rel (%p162) target = $region16
        $region15: #{tdnn_block.2} parent=11 // pred_region
          _
        $region16: #{tdnn_block.2} parent=11 // pred_fallthru
          _
        // Predicated region
        $region17: #{tdnn_block.2} parent=11 // pred_check
          %p165 = pneg %p91
        $region18: #{tdnn_block.2} parent=11 // pred_check_branch
          %167 = sbr.rel (%p165) target = $region20
        $region19: #{tdnn_block.2} parent=11 // pred_region
          _
        $region20: #{tdnn_block.2} parent=11 // pred_fallthru
          _
      $region12: #{tdnn_block.2} parent=5 // pred_fallthru
        _
      %p168 = scmp.lt.s32.totalorder %s11, 4
      // Predicated region
      $region21: #{tdnn_block.2} parent=5 // pred_check
        %p169 = pneg %p168
      $region22: #{tdnn_block.2} parent=5 // pred_check_branch
        %171 = sbr.rel (%p169) target = $region24
      $region23: #{tdnn_block.2} parent=5 // pred_region
        // Predicated region
        $region25: #{tdnn_block.2} parent=23 // pred_check
          %p172 = pneg %p43
        $region26: #{tdnn_block.2} parent=23 // pred_check_branch
          %174 = sbr.rel (%p172) target = $region28
        $region27: #{tdnn_block.2} parent=23 // pred_region
          %p175 = scmp.lt.s32.totalorder %s18, 1
          %s176 = scalar_select %p175, %s18, 1
          %s177 = smul.addr %s176, 33
          %s178 = smul.addr %s177, 8
          %s179 = scalar_lea.vmem %s0, %s178
        $region28: #{tdnn_block.2} parent=23 // pred_fallthru
          _
      $region24: #{tdnn_block.2} parent=5 // pred_fallthru
        _
      %p180 = scmp.le.s32.totalorder 1, %s11
      %p181 = scmp.lt.s32.totalorder %s11, 5
      %p182 = pnand %p180, %p181
      %p183 = pneg %p182
      // Predicated region
      $region29: #{tdnn_block.2} parent=5 // pred_check
        _
      $region30: #{tdnn_block.2} parent=5 // pred_check_branch
        %185 = sbr.rel (%p182) target = $region32
      $region31: #{tdnn_block.2} parent=5 // pred_region
        %s186 = ssub.s32 %s11, 1
        %p187 = scmp.lt.s32.totalorder %s20, 1
        %s188 = scalar_select %p187, %s20, 1
        %s189 = smul.addr %s188, 33
        %s190 = smul.addr %s189, 8
        %s191 = scalar_lea.vmem %s0, %s190
        %p192 = pneg %p49
        %p193 = pneg %p46
        %p194 = pneg %p70
        %p195 = pneg %p67
        %p196 = pneg %p91
        %p197 = pneg %p88
        %p198 = pneg %p119
        %p199 = pneg %p116
        %s200 = sand.u32 %s106, 1
        %s201 = sand.u32 %s106, 1
        %s202 = smul.addr %s201, 16
        %s203 = scalar_lea.vmem [#allocation3], %s202
        %p204 = pneg %p147
        %p205 = pneg %p144
        %p206 = scmp.lt.s32.totalorder %s20, 1
        %s207 = scalar_select %p206, %s20, 1
        %p208 = scmp.lt.s32.totalorder %s21, 1
        %s209 = scalar_select %p208, %s21, 1
        %s210 = smul.addr %s209, 2
        %s211 = smul.addr %s207, 4
        %s212 = sadd.s32 %s210, %s211
        %s213 = smul.addr %s212, 8
        %s214 = scalar_lea.vmem %s4, %s213
        %p215 = scmp.lt.s32.totalorder %s20, 1
        %s216 = scalar_select %p215, %s20, 1
        %s217 = smul.addr %s216, 33
        %s218 = smul.addr %s217, 8
        %s219 = scalar_lea.vmem %s0, %s218
        %p220 = scmp.lt.s32.totalorder %s20, 1
        %s221 = scalar_select %p220, %s20, 1
        %p222 = scmp.lt.s32.totalorder %s21, 1
        %s223 = scalar_select %p222, %s21, 1
        %s224 = smul.addr %s223, 2
        %s225 = smul.addr %s221, 4
        %s226 = sadd.s32 %s224, %s225
        %s227 = smul.addr %s226, 8
        %s228 = scalar_lea.vmem %s4, %s227
        %s229 = smul.u32 %s21, 128
        %s230 = scalar_lea.vmem %s219, %s229
        %v231 = vld [vmem:[%s230] sm:$0xff]
        %v232 = vld [vmem:[%s230 + $0x8] sm:$0xff]
        %v233 = vld [vmem:[%s230 + $0x10] sm:$0xff]
        %v234 = vld [vmem:[%s230 + $0x18] sm:$0xff]
        %v235 = vld [vmem:[%s230 + $0x20] sm:$0xff]
        %v236 = vld [vmem:[%s230 + $0x28] sm:$0xff]
        %v237 = vld [vmem:[%s230 + $0x30] sm:$0xff]
        %v238 = vld [vmem:[%s230 + $0x38] sm:$0xff]
        %v239 = vld [vmem:[%s230 + $0x40] sm:$0xff]
        %v240 = vld [vmem:[%s230 + $0x48] sm:$0xff]
        %v241 = vld [vmem:[%s230 + $0x50] sm:$0xff]
        %v242 = vld [vmem:[%s230 + $0x58] sm:$0xff]
        %v243 = vld [vmem:[%s230 + $0x60] sm:$0xff]
        %v244 = vld [vmem:[%s230 + $0x68] sm:$0xff]
        %v245 = vld [vmem:[%s230 + $0x70] sm:$0xff]
        %v246 = vld [vmem:[%s230 + $0x78] sm:$0xff]
        %vm247 = vcmask 64512
        %248 = vst.msk [vmem:[#allocation2] sm:$0xff] %vm247, %v231
        %249 = vst.msk [vmem:[#allocation2 + $0x8] sm:$0xff] %vm247, %v232
        %250 = vst.msk [vmem:[#allocation2 + $0x10] sm:$0xff] %vm247, %v233
        %251 = vst.msk [vmem:[#allocation2 + $0x18] sm:$0xff] %vm247, %v234
        %252 = vst.msk [vmem:[#allocation2 + $0x20] sm:$0xff] %vm247, %v235
        %253 = vst.msk [vmem:[#allocation2 + $0x28] sm:$0xff] %vm247, %v236
        %254 = vst.msk [vmem:[#allocation2 + $0x30] sm:$0xff] %vm247, %v237
        %255 = vst.msk [vmem:[#allocation2 + $0x38] sm:$0xff] %vm247, %v238
        %256 = vst.msk [vmem:[#allocation2 + $0x40] sm:$0xff] %vm247, %v239
        %257 = vst.msk [vmem:[#allocation2 + $0x48] sm:$0xff] %vm247, %v240
        %258 = vst.msk [vmem:[#allocation2 + $0x50] sm:$0xff] %vm247, %v241
        %259 = vst.msk [vmem:[#allocation2 + $0x58] sm:$0xff] %vm247, %v242
        %260 = vst.msk [vmem:[#allocation2 + $0x60] sm:$0xff] %vm247, %v243
        %261 = vst.msk [vmem:[#allocation2 + $0x68] sm:$0xff] %vm247, %v244
        %262 = vst.msk [vmem:[#allocation2 + $0x70] sm:$0xff] %vm247, %v245
        %263 = vst.msk [vmem:[#allocation2 + $0x78] sm:$0xff] %vm247, %v246
        %s264 = sadd.s32 %s229, 2
        %s265 = scalar_lea.vmem %s219, %s264
        %v266 = vld [vmem:[%s265] sm:$0xff]
        %v267 = vld [vmem:[%s265 + $0x8] sm:$0xff]
        %v268 = vld [vmem:[%s265 + $0x10] sm:$0xff]
        %v269 = vld [vmem:[%s265 + $0x18] sm:$0xff]
        %v270 = vld [vmem:[%s265 + $0x20] sm:$0xff]
        %v271 = vld [vmem:[%s265 + $0x28] sm:$0xff]
        %v272 = vld [vmem:[%s265 + $0x30] sm:$0xff]
        %v273 = vld [vmem:[%s265 + $0x38] sm:$0xff]
        %v274 = vld [vmem:[%s265 + $0x40] sm:$0xff]
        %v275 = vld [vmem:[%s265 + $0x48] sm:$0xff]
        %v276 = vld [vmem:[%s265 + $0x50] sm:$0xff]
        %v277 = vld [vmem:[%s265 + $0x58] sm:$0xff]
        %v278 = vld [vmem:[%s265 + $0x60] sm:$0xff]
        %v279 = vld [vmem:[%s265 + $0x68] sm:$0xff]
        %v280 = vld [vmem:[%s265 + $0x70] sm:$0xff]
        %v281 = vld [vmem:[%s265 + $0x78] sm:$0xff]
        %298 = vrot.lane.b32.xlu0 %v266, 8
        %v299 = vpop.permute.xlu0 %298
        %300 = vrot.lane.b32.xlu0 %v267, 8
        %v301 = vpop.permute.xlu0 %300
        %302 = vrot.lane.b32.xlu0 %v268, 8
        %v303 = vpop.permute.xlu0 %302
        %304 = vrot.lane.b32.xlu0 %v269, 8
        %v305 = vpop.permute.xlu0 %304
        %306 = vrot.lane.b32.xlu0 %v270, 8
        %v307 = vpop.permute.xlu0 %306
        %308 = vrot.lane.b32.xlu0 %v271, 8
        %v309 = vpop.permute.xlu0 %308
        %310 = vrot.lane.b32.xlu0 %v272, 8
        %v311 = vpop.permute.xlu0 %310
        %312 = vrot.lane.b32.xlu0 %v273, 8
        %v313 = vpop.permute.xlu0 %312
        %314 = vrot.lane.b32.xlu0 %v274, 8
        %v315 = vpop.permute.xlu0 %314
        %316 = vrot.lane.b32.xlu0 %v275, 8
        %v317 = vpop.permute.xlu0 %316
        %318 = vrot.lane.b32.xlu0 %v276, 8
        %v319 = vpop.permute.xlu0 %318
        %320 = vrot.lane.b32.xlu0 %v277, 8
        %v321 = vpop.permute.xlu0 %320
        %322 = vrot.lane.b32.xlu0 %v278, 8
        %v323 = vpop.permute.xlu0 %322
        %324 = vrot.lane.b32.xlu0 %v279, 8
        %v325 = vpop.permute.xlu0 %324
        %326 = vrot.lane.b32.xlu0 %v280, 8
        %v327 = vpop.permute.xlu0 %326
        %328 = vrot.lane.b32.xlu0 %v281, 8
        %v329 = vpop.permute.xlu0 %328
        %vm346 = vcmask 130112
        %347 = vst.msk [vmem:[#allocation2] sm:$0xff] %vm346, %v299
        %348 = vst.msk [vmem:[#allocation2 + $0x8] sm:$0xff] %vm346, %v301
        %349 = vst.msk [vmem:[#allocation2 + $0x10] sm:$0xff] %vm346, %v303
        %350 = vst.msk [vmem:[#allocation2 + $0x18] sm:$0xff] %vm346, %v305
        %351 = vst.msk [vmem:[#allocation2 + $0x20] sm:$0xff] %vm346, %v307
        %352 = vst.msk [vmem:[#allocation2 + $0x28] sm:$0xff] %vm346, %v309
        %353 = vst.msk [vmem:[#allocation2 + $0x30] sm:$0xff] %vm346, %v311
        %354 = vst.msk [vmem:[#allocation2 + $0x38] sm:$0xff] %vm346, %v313
        %355 = vst.msk [vmem:[#allocation2 + $0x40] sm:$0xff] %vm346, %v315
        %356 = vst.msk [vmem:[#allocation2 + $0x48] sm:$0xff] %vm346, %v317
        %357 = vst.msk [vmem:[#allocation2 + $0x50] sm:$0xff] %vm346, %v319
        %358 = vst.msk [vmem:[#allocation2 + $0x58] sm:$0xff] %vm346, %v321
        %359 = vst.msk [vmem:[#allocation2 + $0x60] sm:$0xff] %vm346, %v323
        %360 = vst.msk [vmem:[#allocation2 + $0x68] sm:$0xff] %vm346, %v325
        %361 = vst.msk [vmem:[#allocation2 + $0x70] sm:$0xff] %vm346, %v327
        %362 = vst.msk [vmem:[#allocation2 + $0x78] sm:$0xff] %vm346, %v329
        %s363 = sadd.s32 %s229, 4
        %s364 = scalar_lea.vmem %s219, %s363
        %v365 = vld [vmem:[%s364] sm:$0xff]
        %v366 = vld [vmem:[%s364 + $0x8] sm:$0xff]
        %v367 = vld [vmem:[%s364 + $0x10] sm:$0xff]
        %v368 = vld [vmem:[%s364 + $0x18] sm:$0xff]
        %v369 = vld [vmem:[%s364 + $0x20] sm:$0xff]
        %v370 = vld [vmem:[%s364 + $0x28] sm:$0xff]
        %v371 = vld [vmem:[%s364 + $0x30] sm:$0xff]
        %v372 = vld [vmem:[%s364 + $0x38] sm:$0xff]
        %v373 = vld [vmem:[%s364 + $0x40] sm:$0xff]
        %v374 = vld [vmem:[%s364 + $0x48] sm:$0xff]
        %v375 = vld [vmem:[%s364 + $0x50] sm:$0xff]
        %v376 = vld [vmem:[%s364 + $0x58] sm:$0xff]
        %v377 = vld [vmem:[%s364 + $0x60] sm:$0xff]
        %v378 = vld [vmem:[%s364 + $0x68] sm:$0xff]
        %v379 = vld [vmem:[%s364 + $0x70] sm:$0xff]
        %v380 = vld [vmem:[%s364 + $0x78] sm:$0xff]
        %397 = vrot.lane.b32.xlu0 %v365, 16
        %v398 = vpop.permute.xlu0 %397
        %399 = vrot.lane.b32.xlu0 %v366, 16
        %v400 = vpop.permute.xlu0 %399
        %401 = vrot.lane.b32.xlu0 %v367, 16
        %v402 = vpop.permute.xlu0 %401
        %403 = vrot.lane.b32.xlu0 %v368, 16
        %v404 = vpop.permute.xlu0 %403
        %405 = vrot.lane.b32.xlu0 %v369, 16
        %v406 = vpop.permute.xlu0 %405
        %407 = vrot.lane.b32.xlu0 %v370, 16
        %v408 = vpop.permute.xlu0 %407
        %409 = vrot.lane.b32.xlu0 %v371, 16
        %v410 = vpop.permute.xlu0 %409
        %411 = vrot.lane.b32.xlu0 %v372, 16
        %v412 = vpop.permute.xlu0 %411
        %413 = vrot.lane.b32.xlu0 %v373, 16
        %v414 = vpop.permute.xlu0 %413
        %415 = vrot.lane.b32.xlu0 %v374, 16
        %v416 = vpop.permute.xlu0 %415
        %417 = vrot.lane.b32.xlu0 %v375, 16
        %v418 = vpop.permute.xlu0 %417
        %419 = vrot.lane.b32.xlu0 %v376, 16
        %v420 = vpop.permute.xlu0 %419
        %421 = vrot.lane.b32.xlu0 %v377, 16
        %v422 = vpop.permute.xlu0 %421
        %423 = vrot.lane.b32.xlu0 %v378, 16
        %v424 = vpop.permute.xlu0 %423
        %425 = vrot.lane.b32.xlu0 %v379, 16
        %v426 = vpop.permute.xlu0 %425
        %427 = vrot.lane.b32.xlu0 %v380, 16
        %v428 = vpop.permute.xlu0 %427
        %vm445 = vcmask 195712
        %446 = vst.msk [vmem:[#allocation2] sm:$0xff] %vm445, %v398
        %447 = vst.msk [vmem:[#allocation2 + $0x8] sm:$0xff] %vm445, %v400
        %448 = vst.msk [vmem:[#allocation2 + $0x10] sm:$0xff] %vm445, %v402
        %449 = vst.msk [vmem:[#allocation2 + $0x18] sm:$0xff] %vm445, %v404
        %450 = vst.msk [vmem:[#allocation2 + $0x20] sm:$0xff] %vm445, %v406
        %451 = vst.msk [vmem:[#allocation2 + $0x28] sm:$0xff] %vm445, %v408
        %452 = vst.msk [vmem:[#allocation2 + $0x30] sm:$0xff] %vm445, %v410
        %453 = vst.msk [vmem:[#allocation2 + $0x38] sm:$0xff] %vm445, %v412
        %454 = vst.msk [vmem:[#allocation2 + $0x40] sm:$0xff] %vm445, %v414
        %455 = vst.msk [vmem:[#allocation2 + $0x48] sm:$0xff] %vm445, %v416
        %456 = vst.msk [vmem:[#allocation2 + $0x50] sm:$0xff] %vm445, %v418
        %457 = vst.msk [vmem:[#allocation2 + $0x58] sm:$0xff] %vm445, %v420
        %458 = vst.msk [vmem:[#allocation2 + $0x60] sm:$0xff] %vm445, %v422
        %459 = vst.msk [vmem:[#allocation2 + $0x68] sm:$0xff] %vm445, %v424
        %460 = vst.msk [vmem:[#allocation2 + $0x70] sm:$0xff] %vm445, %v426
        %461 = vst.msk [vmem:[#allocation2 + $0x78] sm:$0xff] %vm445, %v428
        %v462 = vld [vmem:[%s1] sm:$0xff]
        %v463 = vld [vmem:[%s1 + $0x8] sm:$0xff]
        %v464 = vld [vmem:[#allocation2] sm:$0xff]
        %v465 = vld [vmem:[#allocation2 + $0x8] sm:$0xff]
        %v466 = vld [vmem:[#allocation2 + $0x10] sm:$0xff]
        %v467 = vld [vmem:[#allocation2 + $0x18] sm:$0xff]
        %v468 = vld [vmem:[#allocation2 + $0x20] sm:$0xff]
        %v469 = vld [vmem:[#allocation2 + $0x28] sm:$0xff]
        %v470 = vld [vmem:[#allocation2 + $0x30] sm:$0xff]
        %v471 = vld [vmem:[#allocation2 + $0x38] sm:$0xff]
        %v472 = vld [vmem:[#allocation2 + $0x40] sm:$0xff]
        %v473 = vld [vmem:[#allocation2 + $0x48] sm:$0xff]
        %v474 = vld [vmem:[#allocation2 + $0x50] sm:$0xff]
        %v475 = vld [vmem:[#allocation2 + $0x58] sm:$0xff]
        %v476 = vld [vmem:[#allocation2 + $0x60] sm:$0xff]
        %v477 = vld [vmem:[#allocation2 + $0x68] sm:$0xff]
        %v478 = vld [vmem:[#allocation2 + $0x70] sm:$0xff]
        %v479 = vld [vmem:[#allocation2 + $0x78] sm:$0xff]
        %v480 = vld [vmem:[%s2] sm:$0xff]
        %v481 = vld [vmem:[%s2 + $0x8] sm:$0xff]
        %483 = vset.pattern.permute.xlu0 0
        %484 = vperm.xlu0 %483, %v480
        %v485 = vpop.permute.xlu0 %484
        %488 = vset.pattern.permute.xlu0 0
        %489 = vperm.xlu0 %488, %v481
        %v490 = vpop.permute.xlu0 %489
        %vm492 = vcmask 195584
        %v494 = vsel %vm492, %v462, 0
        %v497 = vsel %vm492, %v463, 0
        %v500 = vsel %vm492, %v464, 0
        %v503 = vsel %vm492, %v465, 0
        %v506 = vsel %vm492, %v466, 0
        %v509 = vsel %vm492, %v467, 0
        %v512 = vsel %vm492, %v468, 0
        %v515 = vsel %vm492, %v469, 0
        %v518 = vsel %vm492, %v470, 0
        %v521 = vsel %vm492, %v471, 0
        %v524 = vsel %vm492, %v472, 0
        %v527 = vsel %vm492, %v473, 0
        %v530 = vsel %vm492, %v474, 0
        %v533 = vsel %vm492, %v475, 0
        %v536 = vsel %vm492, %v476, 0
        %v539 = vsel %vm492, %v477, 0
        %v542 = vsel %vm492, %v478, 0
        %v545 = vsel %vm492, %v479, 0
        %547 = vmatprep.subr.mxu0 0.0
        %548 = vmatpush1.xpose.msra.mxu0 %v545
        %549 = vmatprep.subr.mxu0 0.0
        %550 = vmatpush1.xpose.msra.mxu0 %v542
        %551 = vmatprep.subr.mxu0 0.0
        %552 = vmatpush1.xpose.msra.mxu0 %v539
        %553 = vmatprep.subr.mxu0 0.0
        %554 = vmatpush1.xpose.msra.mxu0 %v536
        %555 = vmatprep.subr.mxu0 0.0
        %556 = vmatpush1.xpose.msra.mxu0 %v533
        %557 = vmatprep.subr.mxu0 0.0
        %558 = vmatpush1.xpose.msra.mxu0 %v530
        %559 = vmatprep.subr.mxu0 0.0
        %560 = vmatpush1.xpose.msra.mxu0 %v527
        %561 = vmatprep.subr.mxu0 0.0
        %562 = vmatpush1.xpose.msra.mxu0 %v524
        %563 = vmatprep.subr.mxu0 0.0
        %564 = vmatpush1.xpose.msra.mxu0 %v521
        %565 = vmatprep.subr.mxu0 0.0
        %566 = vmatpush1.xpose.msra.mxu0 %v518
        %567 = vmatprep.subr.mxu0 0.0
        %568 = vmatpush1.xpose.msra.mxu0 %v515
        %569 = vmatprep.subr.mxu0 0.0
        %570 = vmatpush1.xpose.msra.mxu0 %v512
        %571 = vmatprep.subr.mxu0 0.0
        %572 = vmatpush1.xpose.msra.mxu0 %v509
        %573 = vmatprep.subr.mxu0 0.0
        %574 = vmatpush1.xpose.msra.mxu0 %v506
        %575 = vmatprep.subr.mxu0 0.0
        %576 = vmatpush1.xpose.msra.mxu0 %v503
        %577 = vmatprep.subr.mxu0 0.0
        %578 = vmatpush1.xpose.msra.mxu0 %v500
        %579 = vmatprep.subr.mxu0 0.0
        %580 = vmatpush2.xpose.msra.mxu0 0.0
        %581 = vmatprep.subr.mxu0 0.0
        %582 = vmatpush2.xpose.msra.mxu0 0.0
        %583 = vmatprep.subr.mxu0 0.0
        %584 = vmatpush2.xpose.msra.mxu0 0.0
        %585 = vmatprep.subr.mxu0 0.0
        %586 = vmatpush2.xpose.msra.mxu0 0.0
        %587 = vmatprep.subr.mxu0 0.0
        %588 = vmatpush2.xpose.msra.mxu0 0.0
        %589 = vmatprep.subr.mxu0 0.0
        %590 = vmatpush2.xpose.msra.mxu0 0.0
        %591 = vmatprep.subr.mxu0 0.0
        %592 = vmatpush2.xpose.msra.mxu0 0.0
        %593 = vmatprep.subr.mxu0 0.0
        %594 = vmatpush2.xpose.msra.mxu0 0.0
        %595 = vmatprep.subr.mxu0 0.0
        %596 = vmatpush2.xpose.msra.mxu0 0.0
        %597 = vmatprep.subr.mxu0 0.0
        %598 = vmatpush2.xpose.msra.mxu0 0.0
        %599 = vmatprep.subr.mxu0 0.0
        %600 = vmatpush2.xpose.msra.mxu0 0.0
        %601 = vmatprep.subr.mxu0 0.0
        %602 = vmatpush2.xpose.msra.mxu0 0.0
        %603 = vmatprep.subr.mxu0 0.0
        %604 = vmatpush2.xpose.msra.mxu0 0.0
        %605 = vmatprep.subr.mxu0 0.0
        %606 = vmatpush2.xpose.msra.mxu0 0.0
        %607 = vmatprep.subr.mxu0 0.0
        %608 = vmatpush2.xpose.msra.mxu0 0.0
        %609 = vmatprep.subr.mxu0 0.0
        %610 = vmatpush2.xpose.msra.mxu0 0.0
        %611 = vmatprep.mubr.f32.mxu0 0.0
        %612 = vmatmul.mubr.f32.gmra.mxu0 %v494
        %v613 = vpop.f32.mrf.mxu0
        %v614 = vadd.f32 %v485, %v613
        %v615 = vpop.f32.mrf.mxu0
        %616 = vmatprep.mubr.f32.mxu0 0.0
        %617 = vmatmul.mubr.f32.gmra.mxu0 %v497
        %v618 = vpop.f32.mrf.mxu0
        %v619 = vadd.f32 %v490, %v618
        %v620 = vpop.f32.mrf.mxu0
        %621 = vdwg.mxu0
        %v622 = vmax.f32 %v614, 0.0
        %v623 = vmax.f32 %v619, 0.0
        %624 = vst [vmem:[%s203] sm:$0xff] %v622
        %625 = vst [vmem:[%s203 + $0x8] sm:$0xff] %v623
        %v626 = vlaneseq
        %v627 = vand.u32 %v626, 127
        %v628 = vstv %s229
        %v629 = vadd.s32 %v628, %v627
        %vm630 = vcmp.lt.s32.totalorder %v629, 160
        %v631 = vsel %vm630, %v622, 0.0
        %v632 = vsel %vm630, %v623, 0.0
        %633 = vadd.xlane.f32.xlu0 %v631
        %v634 = vpop.xlane.xlu0 %633
        %635 = vadd.xlane.f32.xlu0 %v632
        %v636 = vpop.xlane.xlu0 %635
        %v637 = vmul.f32 %v631, %v631
        %v638 = vmul.f32 %v632, %v632
        %639 = vadd.xlane.f32.xlu0 %v637
        %v640 = vpop.xlane.xlu0 %639
        %641 = vadd.xlane.f32.xlu0 %v638
        %v642 = vpop.xlane.xlu0 %641
        %vm643 = vcmask 7168
        %v644 = vsel %vm643, %v634, %v640
        %v645 = vsel %vm643, %v636, %v642
        %vm646 = vcmask 15360
        %647 = vst.msk [vmem:[%s228] sm:$0xff] %vm646, %v644
        %648 = vst.msk [vmem:[%s228 + $0x8] sm:$0xff] %vm646, %v645
        %s649 = sand.u32 %s106, 1
        %s650 = sand.u32 %s106, 1
        %s651 = smul.addr %s650, 16
        %s652 = scalar_lea.vmem [#allocation3], %s651
        %p653 = scmp.lt.s32.totalorder %s20, 1
        %s654 = scalar_select %p653, %s20, 1
        %p655 = scmp.lt.s32.totalorder %s21, 1
        %s656 = scalar_select %p655, %s21, 1
        %s657 = smul.addr %s656, 2
        %s658 = smul.addr %s654, 4
        %s659 = sadd.s32 %s657, %s658
        %s660 = smul.addr %s659, 8
        %s661 = scalar_lea.vmem %s4, %s660
        // Predicated region
        $region33: #{tdnn_block.2} parent=31 // pred_check
          %p662 = pneg %p116
        $region34: #{tdnn_block.2} parent=31 // pred_check_branch
          %664 = sbr.rel (%p662) target = $region36
        $region35: #{tdnn_block.2} parent=31 // pred_region
          %s665 = smul.addr %s20, 4
          %s666 = sadd.s32 %s21, %s665
          %s667 = smul.addr %s666, 8
          %s668 = scalar_lea.vmem %s3, %s667
          // Predicated region
          $region37: #{tdnn_block.2} parent=35 // pred_check
            _
          $region38: #{tdnn_block.2} parent=35 // pred_check_branch
            %670 = sbr.rel (0) target = $region40
          $region39: #{tdnn_block.2} parent=35 // pred_region
            // Predicated region
            $region41: #{tdnn_block.2} parent=39 // pred_check
              _
            $region42: #{tdnn_block.2} parent=39 // pred_check_branch
              %672 = sbr.rel (0) target = $region44
            $region43: #{tdnn_block.2} parent=39 // pred_region
              // Predicated region
              $region56: #{tdnn_block.2} parent=43 // pred_check
                _
              $region57: #{tdnn_block.2} parent=43 // pred_check_branch
                %690 = sbr.rel (0) target = $region59
              $region58: #{tdnn_block.2} parent=43 // pred_region
                loop: start=0, step=1, limit=1
                $region60: #{tdnn_block.2} parent=58 // loop_pre_header
                  _
                $region61: #{tdnn_block.2} parent=58 // loop_header
                  %s692 = sphi 0, %s696
                  %p693 = scmp.ge.s32.totalorder %s692, 1
                  %s697 = sphi %s652, %s652
                  %s698 = sphi %s668, %s668
                $region62: #{tdnn_block.2} parent=58 // loop_header_branch
                  %695 = sbr.rel (%p693) target = $region66
                $region63: #{tdnn_block.2} parent=58 // loop_body
                  %v699 = vld [vmem:[%s697] sm:$0xff]
                  %700 = vst [vmem:[%s698] sm:$0xff] %v699
                  %v701 = vld [vmem:[%s697 + $0x8] sm:$0xff]
                  %702 = vst [vmem:[%s698 + $0x10] sm:$0xff] %v701
                $region64: #{tdnn_block.2} parent=58 // loop_footer
                  %s696 = sadd.s32 1, %s692
                $region65: #{tdnn_block.2} parent=58 // loop_footer_branch
                  %691 = sbr.rel target = $region61
                $region66: #{tdnn_block.2} parent=58 // loop_exit
                  _
              $region59: #{tdnn_block.2} parent=43 // pred_fallthru
                _
              // Predicated region
              $region67: #{tdnn_block.2} parent=43 // pred_check
                _
              $region68: #{tdnn_block.2} parent=43 // pred_check_branch
                %704 = sbr.rel target = $region70
              $region69: #{tdnn_block.2} parent=43 // pred_region
                _
              $region70: #{tdnn_block.2} parent=43 // pred_fallthru
                _
            $region44: #{tdnn_block.2} parent=39 // pred_fallthru
              _
            // Predicated region
            $region45: #{tdnn_block.2} parent=39 // pred_check
              _
            $region46: #{tdnn_block.2} parent=39 // pred_check_branch
              %674 = sbr.rel target = $region48
            $region47: #{tdnn_block.2} parent=39 // pred_region
              %s676 = ssub.s32 256, 1
              loop: start=0, step=1, limit=1
              $region49: #{tdnn_block.2} parent=47 // loop_pre_header
                _
              $region50: #{tdnn_block.2} parent=47 // loop_header
                %s678 = sphi 0, %s682
                %p679 = scmp.ge.s32.totalorder %s678, 1
                %s683 = sphi %s652, %s652
                %s684 = sphi %s668, %s668
              $region51: #{tdnn_block.2} parent=47 // loop_header_branch
                %681 = sbr.rel (%p679) target = $region55
              $region52: #{tdnn_block.2} parent=47 // loop_body
                %v685 = vld [vmem:[%s683] sm:%s676]
                %686 = vst [vmem:[%s684] sm:%s676] %v685
                %v687 = vld [vmem:[%s683 + $0x8] sm:%s676]
                %688 = vst [vmem:[%s684 + $0x10] sm:%s676] %v687
              $region53: #{tdnn_block.2} parent=47 // loop_footer
                %s682 = sadd.s32 1, %s678
              $region54: #{tdnn_block.2} parent=47 // loop_footer_branch
                %677 = sbr.rel target = $region50
              $region55: #{tdnn_block.2} parent=47 // loop_exit
                _
            $region48: #{tdnn_block.2} parent=39 // pred_fallthru
              _
          $region40: #{tdnn_block.2} parent=35 // pred_fallthru
            _
          %705 = vnop
        $region36: #{tdnn_block.2} parent=31 // pred_fallthru
          _
        // Predicated region
        $region71: #{tdnn_block.2} parent=31 // pred_check
          %p706 = pneg %p144
        $region72: #{tdnn_block.2} parent=31 // pred_check_branch
          %708 = sbr.rel (%p706) target = $region74
        $region73: #{tdnn_block.2} parent=31 // pred_region
          _
        $region74: #{tdnn_block.2} parent=31 // pred_fallthru
          _
      $region32: #{tdnn_block.2} parent=5 // pred_fallthru
        _
      %p709 = scmp.le.s32.totalorder 2, %s11
      // Predicated region
      $region75: #{tdnn_block.2} parent=5 // pred_check
        %p710 = pneg %p709
      $region76: #{tdnn_block.2} parent=5 // pred_check_branch
        %712 = sbr.rel (%p710) target = $region78
      $region77: #{tdnn_block.2} parent=5 // pred_region
        %s713 = ssub.s32 %s11, 2
        // Predicated region
        $region79: #{tdnn_block.2} parent=77 // pred_check
          %p714 = pneg %p122
        $region80: #{tdnn_block.2} parent=77 // pred_check_branch
          %716 = sbr.rel (%p714) target = $region82
        $region81: #{tdnn_block.2} parent=77 // pred_region
          %s717 = sand.u32 %s107, 1
          %s718 = sand.u32 %s107, 1
          %s719 = smul.addr %s718, 16
          %s720 = scalar_lea.vmem [#allocation3], %s719
        $region82: #{tdnn_block.2} parent=77 // pred_fallthru
          _
        // Predicated region
        $region83: #{tdnn_block.2} parent=77 // pred_check
          %p721 = pneg %p150
        $region84: #{tdnn_block.2} parent=77 // pred_check_branch
          %723 = sbr.rel (%p721) target = $region86
        $region85: #{tdnn_block.2} parent=77 // pred_region
          %p724 = scmp.lt.s32.totalorder %s22, 1
          %s725 = scalar_select %p724, %s22, 1
          %p726 = scmp.lt.s32.totalorder %s23, 1
          %s727 = scalar_select %p726, %s23, 1
          %s728 = smul.addr %s727, 2
          %s729 = smul.addr %s725, 4
          %s730 = sadd.s32 %s728, %s729
          %s731 = smul.addr %s730, 8
          %s732 = scalar_lea.vmem %s4, %s731
        $region86: #{tdnn_block.2} parent=77 // pred_fallthru
          _
      $region78: #{tdnn_block.2} parent=5 // pred_fallthru
        _
    $region6: #{tdnn_block.2} parent=1 // loop_footer
      %s15 = sadd.s32 1, %s11
    $region7: #{tdnn_block.2} parent=1 // loop_footer_branch
      %10 = sbr.rel target = $region3
    $region8: #{tdnn_block.2} parent=1 // loop_exit
      _

</llo_original>
